<compile_context>
chip_gen: v7x
topology: tpu7x:2x2x1
jax: 0.10.0
libtpu: 0.0.40
codegen_flags: <defaults>
</compile_context>

<pallas_src>
import functools

import jax
import jax.numpy as jnp
from jax.experimental import pallas as pl
from jax.experimental.pallas import tpu as pltpu


# ----------------------------------------------------------------------------- kernels
def _scatter_rows(ai_ref, attack_vmem, out_hbm, sem, num_template, chunk, col0):
    """Row-scatter attacked frames into the aliased seq buffer.

    Issue all DMAs first, then wait on all (they overlap each other and the
    next chunk's input prefetch).
    """
    copies = []
    for t in range(num_template):
        frame = ai_ref[t]                         # data-dependent destination row
        copies.append(
            pltpu.make_async_copy(
                attack_vmem.at[pl.ds(t, 1), :],
                out_hbm.at[pl.ds(frame, 1), pl.ds(col0, chunk)],
                sem.at[t],
            ))
    for cp in copies:
        cp.start()
    for cp in copies:
        cp.wait()


def _attack_blend_kernel(ai_ref, seq_hbm, tmpl_ref, refer_ref, mask_ref,
                         out_hbm, attack_vmem, sem, *, num_template, chunk):
    # seq_hbm is the aliased full sequence buffer; it is never read or written
    # here — untouched frames keep their values purely via output aliasing.
    del seq_hbm
    col0 = pl.program_id(0) * chunk

    s = jax.nn.sigmoid(tmpl_ref[...].astype(jnp.float32))      # EUP
    r = refer_ref[...].astype(jnp.float32)
    m = mask_ref[...].astype(jnp.float32)
    attack_vmem[...] = (r + m * (s - r)).astype(attack_vmem.dtype)   # FMA-style blend

    _scatter_rows(ai_ref, attack_vmem, out_hbm, sem, num_template, chunk, col0)


def _attack_sigmoid_kernel(ai_ref, seq_hbm, tmpl_ref,
                           out_hbm, attack_vmem, sem, *, num_template, chunk):
    del seq_hbm
    col0 = pl.program_id(0) * chunk
    attack_vmem[...] = jax.nn.sigmoid(
        tmpl_ref[...].astype(jnp.float32)).astype(attack_vmem.dtype)
    _scatter_rows(ai_ref, attack_vmem, out_hbm, sem, num_template, chunk, col0)


# ----------------------------------------------------------------------------- helpers
def _pick_hw_chunk(HW, num_template, itemsize, n_streams, budget_bytes=8 << 20):
    """Largest HW chunk (divisor of HW, multiple of 128, or HW itself) whose
    double-buffered input blocks + scratch stay under `budget_bytes`."""
    per_col = (2 * n_streams + 1) * num_template * itemsize
    if HW * per_col <= budget_bytes:
        return HW
    best, found = HW, False
    c = 128
    while c < HW:
        if HW % c == 0 and c * per_col <= budget_bytes:
            best, found = c, True
        c += 128
    return best if found else HW


# ----------------------------------------------------------------------------- drivers
@functools.partial(jax.jit, donate_argnums=(0,))
def _run_masked(seq, template, refer_seq, edge_mask, attack_index):
    _, num_frames, H, W = seq.shape
    num_template = template.shape[1]
    HW = H * W
    dt = seq.dtype
    itemsize = jnp.dtype(dt).itemsize

    # Lane-dense 2D layout: rows = frames/templates, cols = H*W.
    seq2 = seq.reshape(num_frames, HW)
    tmpl2 = template.reshape(num_template, HW)
    refer2 = refer_seq.reshape(num_template, HW)
    mask2 = edge_mask.reshape(num_template, HW)

    chunk = _pick_hw_chunk(HW, num_template, itemsize, n_streams=3)
    num_chunks = HW // chunk
    blk = (num_template, chunk)
    in_map = lambda c, ai: (0, c)           # noqa: E731

    kern = functools.partial(_attack_blend_kernel,
                             num_template=num_template, chunk=chunk)

    vmem_need = (2 * 3 + 1) * num_template * chunk * itemsize + (2 << 20)
    vmem_limit = max(16 << 20, min(vmem_need, 64 << 20))

    out2 = pl.pallas_call(
        kern,
        out_shape=jax.ShapeDtypeStruct((num_frames, HW), dt),
        grid_spec=pltpu.PrefetchScalarGridSpec(
            num_scalar_prefetch=1,
            grid=(num_chunks,),
            in_specs=[
                pl.BlockSpec(memory_space=pl.ANY),   # seq: raw HBM ref, aliased, no DMA
                pl.BlockSpec(blk, in_map),           # template
                pl.BlockSpec(blk, in_map),           # refer_seq
                pl.BlockSpec(blk, in_map),           # edge_mask
            ],
            out_specs=pl.BlockSpec(memory_space=pl.ANY),  # raw HBM ref, manual scatter
            scratch_shapes=[
                pltpu.VMEM((num_template, chunk), dt),
                pltpu.SemaphoreType.DMA((num_template,)),
            ],
        ),
        # Positional args: (attack_index, seq2, tmpl2, refer2, mask2);
        # alias seq2 (operand 1; the scalar-prefetch arg is operand 0) to output 0.
        input_output_aliases={1: 0},
        compiler_params=pltpu.CompilerParams(
            dimension_semantics=("parallel",),        # disjoint column ranges -> v7x 2-TC
            vmem_limit_bytes=vmem_limit),
        cost_estimate=pl.CostEstimate(
            flops=3 * num_template * HW,
            transcendentals=num_template * HW,
            bytes_accessed=4 * num_template * HW * itemsize),
    )(attack_index, seq2, tmpl2, refer2, mask2)

    return out2.reshape(1, num_frames, H, W)


@functools.partial(jax.jit, donate_argnums=(0,))
def _run_unmasked(seq, template, attack_index):
    _, num_frames, H, W = seq.shape
    num_template = template.shape[1]
    HW = H * W
    dt = seq.dtype
    itemsize = jnp.dtype(dt).itemsize

    seq2 = seq.reshape(num_frames, HW)
    tmpl2 = template.reshape(num_template, HW)

    chunk = _pick_hw_chunk(HW, num_template, itemsize, n_streams=1)
    num_chunks = HW // chunk
    blk = (num_template, chunk)

    kern = functools.partial(_attack_sigmoid_kernel,
                             num_template=num_template, chunk=chunk)

    vmem_need = (2 * 1 + 1) * num_template * chunk * itemsize + (2 << 20)
    vmem_limit = max(16 << 20, min(vmem_need, 64 << 20))

    out2 = pl.pallas_call(
        kern,
        out_shape=jax.ShapeDtypeStruct((num_frames, HW), dt),
        grid_spec=pltpu.PrefetchScalarGridSpec(
            num_scalar_prefetch=1,
            grid=(num_chunks,),
            in_specs=[
                pl.BlockSpec(memory_space=pl.ANY),             # seq (aliased)
                pl.BlockSpec(blk, lambda c, ai: (0, c)),       # template
            ],
            out_specs=pl.BlockSpec(memory_space=pl.ANY),
            scratch_shapes=[
                pltpu.VMEM((num_template, chunk), dt),
                pltpu.SemaphoreType.DMA((num_template,)),
            ],
        ),
        input_output_aliases={1: 0},
        compiler_params=pltpu.CompilerParams(
            dimension_semantics=("parallel",),
            vmem_limit_bytes=vmem_limit),
        cost_estimate=pl.CostEstimate(
            flops=num_template * HW,
            transcendentals=num_template * HW,
            bytes_accessed=2 * num_template * HW * itemsize),
    )(attack_index, seq2, tmpl2)

    return out2.reshape(1, num_frames, H, W)


# ----------------------------------------------------------------------------- wrapper
def template_attack_block_forward(seq, template, refer_seq, attack_index,
                                  edge_mask=None):
    """Pallas implementation of TemplateAttackBlock.forward.

    seq:          (1, num_frames, H, W)       -- DONATED (aliased to the output)
    template:     (1, num_template, H, W)     (nn.Parameter analogue)
    refer_seq:    (1, num_template, H, W)
    attack_index: (num_template,) int frame indices
    edge_mask:    (1, num_template, H, W) or None
    """
    attack_index = attack_index.astype(jnp.int32)
    if edge_mask is None:
        return _run_unmasked(seq, template, attack_index)
    return _run_masked(seq, template, refer_seq, edge_mask, attack_index)


# ----------------------------------------------------------------------------- reference
def _reference_forward(seq, template, refer_seq, attack_index, edge_mask=None):
    if edge_mask is None:
        attack_seq = jax.nn.sigmoid(template)
    else:
        attack_seq = jax.nn.sigmoid(template) * edge_mask + refer_seq * (1.0 - edge_mask)
    return seq.at[:, attack_index, :, :].set(attack_seq)


if __name__ == "__main__":
    num_frames, num_template, H, W = 8, 3, 16, 16

    key = jax.random.PRNGKey(0)
    k_tmpl, k_seq, k_ref, k_mask = jax.random.split(key, 4)

    # Deterministic "parameter" init: torch.rand((1, num_template, H, W)) analogue.
    template = jax.random.uniform(k_tmpl, (1, num_template, H, W), dtype=jnp.float32)

    seq = jax.random.uniform(k_seq, (1, num_frames, H, W), dtype=jnp.float32)
    refer_seq = jax.random.uniform(k_ref, (1, num_template, H, W), dtype=jnp.float32)
    edge_mask = jax.random.uniform(k_mask, (1, num_template, H, W), dtype=jnp.float32)
    attack_index = jnp.array([1, 4, 6], dtype=jnp.int32)

    # References computed first (the seq arguments to the kernel are donated).
    ref1 = _reference_forward(seq, template, refer_seq, attack_index, edge_mask)
    ref2 = _reference_forward(seq, template, refer_seq, attack_index, None)

    seq_a = jnp.copy(seq)   # independent buffers: each kernel call donates its seq
    seq_b = jnp.copy(seq)

    # With edge_mask
    out1 = jax.block_until_ready(
        template_attack_block_forward(seq_a, template, refer_seq, attack_index, edge_mask))
    assert jnp.allclose(out1, ref1, atol=1e-6), "mismatch with edge_mask"

    # Without edge_mask (None branch)
    out2 = jax.block_until_ready(
        template_attack_block_forward(seq_b, template, refer_seq, attack_index, None))
    assert jnp.allclose(out2, ref2, atol=1e-6), "mismatch without edge_mask"

    print("KERNEL_OK")
</pallas_src>

<mosaic_0001>
module attributes {stable_mosaic.version = 11 : i64} {
  func.func @_attack_blend_kernel(%arg0: i32, %arg1: memref<3xi32, #tpu.memory_space<smem>>, %arg2: memref<8x256xf32, #tpu.memory_space<any>>, %arg3: memref<3x256xf32, #tpu.memory_space<vmem>>, %arg4: memref<3x256xf32, #tpu.memory_space<vmem>>, %arg5: memref<3x256xf32, #tpu.memory_space<vmem>>, %arg6: memref<8x256xf32, #tpu.memory_space<any>>, %arg7: memref<3x256xf32, #tpu.memory_space<vmem>>, %arg8: memref<3x!tpu.dma_semaphore, #tpu.memory_space<semaphore_mem>>) attributes {dimension_semantics = [#tpu.dimension_semantics<parallel>], iteration_bounds = array<i64: 1>, scalar_prefetch = 1 : i64, scratch_operands = 2 : i64, tpu.core_type = #tpu.core_type<tc>, window_params = [{}, {transform_indices = @transform_1, window_bounds = array<i64: 3, 256>}, {transform_indices = @transform_2, window_bounds = array<i64: 3, 256>}, {transform_indices = @transform_3, window_bounds = array<i64: 3, 256>}, {}]} {
    %c256_i32 = arith.constant 256 : i32
    %0 = arith.muli %arg0, %c256_i32 : i32
    %c0 = arith.constant 0 : index
    %c0_0 = arith.constant 0 : index
    %1 = vector.load %arg3[%c0, %c0_0] : memref<3x256xf32, #tpu.memory_space<vmem>>, vector<3x256xf32>
    %2 = arith.negf %1 : vector<3x256xf32>
    %3 = math.exp %2 : vector<3x256xf32>
    %cst = arith.constant 1.000000e+00 : f32
    %4 = vector.broadcast %cst : f32 to vector<3x256xf32>
    %5 = arith.addf %4, %3 : vector<3x256xf32>
    %6 = arith.divf %4, %5 : vector<3x256xf32>
    %c0_1 = arith.constant 0 : index
    %c0_2 = arith.constant 0 : index
    %7 = vector.load %arg4[%c0_1, %c0_2] : memref<3x256xf32, #tpu.memory_space<vmem>>, vector<3x256xf32>
    %c0_3 = arith.constant 0 : index
    %c0_4 = arith.constant 0 : index
    %8 = vector.load %arg5[%c0_3, %c0_4] : memref<3x256xf32, #tpu.memory_space<vmem>>, vector<3x256xf32>
    %9 = arith.subf %6, %7 : vector<3x256xf32>
    %10 = arith.mulf %8, %9 : vector<3x256xf32>
    %11 = arith.addf %7, %10 : vector<3x256xf32>
    %c0_5 = arith.constant 0 : index
    %c0_6 = arith.constant 0 : index
    %12 = vector.load %arg7[%c0_5, %c0_6] : memref<3x256xf32, #tpu.memory_space<vmem>>, vector<3x256xf32>
    tpu.vector_store %arg7[%c0_5, %c0_6], %11 {strides = array<i32>} : memref<3x256xf32, #tpu.memory_space<vmem>>, vector<3x256xf32>,
    %c0_7 = arith.constant 0 : index
    %13 = memref.load %arg1[%c0_7] : memref<3xi32, #tpu.memory_space<smem>>
    %c1 = arith.constant 1 : index
    %14 = memref.load %arg1[%c1] : memref<3xi32, #tpu.memory_space<smem>>
    %c2 = arith.constant 2 : index
    %15 = memref.load %arg1[%c2] : memref<3xi32, #tpu.memory_space<smem>>
    %c0_i32 = arith.constant 0 : i32
    %c0_i32_8 = arith.constant 0 : i32
    %c0_i32_9 = arith.constant 0 : i32
    %16 = tpu.memref_slice %arg7[%c0_i32_8, %c0_i32_9] : memref<3x256xf32, #tpu.memory_space<vmem>> -> memref<1x256xf32, #tpu.memory_space<vmem>>
    %17 = tpu.memref_slice %arg6[%13, %0] : memref<8x256xf32, #tpu.memory_space<any>> -> memref<1x256xf32, #tpu.memory_space<any>>
    %18 = tpu.memref_slice %arg8[%c0_i32] : memref<3x!tpu.dma_semaphore, #tpu.memory_space<semaphore_mem>> -> memref<1x!tpu.dma_semaphore, #tpu.memory_space<semaphore_mem>>
    %19 = tpu.memref_squeeze %18 : memref<1x!tpu.dma_semaphore, #tpu.memory_space<semaphore_mem>> -> memref<!tpu.dma_semaphore, #tpu.memory_space<semaphore_mem>>
    tpu.enqueue_dma source(%16 : memref<1x256xf32, #tpu.memory_space<vmem>>) target(%17 : memref<1x256xf32, #tpu.memory_space<any>>) target_semaphore(%19 : memref<!tpu.dma_semaphore, #tpu.memory_space<semaphore_mem>>)
    %c1_i32 = arith.constant 1 : i32
    %c1_i32_10 = arith.constant 1 : i32
    %c0_i32_11 = arith.constant 0 : i32
    %20 = tpu.memref_slice %arg7[%c1_i32_10, %c0_i32_11] : memref<3x256xf32, #tpu.memory_space<vmem>> -> memref<1x256xf32, #tpu.memory_space<vmem>>
    %21 = tpu.memref_slice %arg6[%14, %0] : memref<8x256xf32, #tpu.memory_space<any>> -> memref<1x256xf32, #tpu.memory_space<any>>
    %22 = tpu.memref_slice %arg8[%c1_i32] : memref<3x!tpu.dma_semaphore, #tpu.memory_space<semaphore_mem>> -> memref<1x!tpu.dma_semaphore, #tpu.memory_space<semaphore_mem>>
    %23 = tpu.memref_squeeze %22 : memref<1x!tpu.dma_semaphore, #tpu.memory_space<semaphore_mem>> -> memref<!tpu.dma_semaphore, #tpu.memory_space<semaphore_mem>>
    tpu.enqueue_dma source(%20 : memref<1x256xf32, #tpu.memory_space<vmem>>) target(%21 : memref<1x256xf32, #tpu.memory_space<any>>) target_semaphore(%23 : memref<!tpu.dma_semaphore, #tpu.memory_space<semaphore_mem>>)
    %c2_i32 = arith.constant 2 : i32
    %c2_i32_12 = arith.constant 2 : i32
    %c0_i32_13 = arith.constant 0 : i32
    %24 = tpu.memref_slice %arg7[%c2_i32_12, %c0_i32_13] : memref<3x256xf32, #tpu.memory_space<vmem>> -> memref<1x256xf32, #tpu.memory_space<vmem>>
    %25 = tpu.memref_slice %arg6[%15, %0] : memref<8x256xf32, #tpu.memory_space<any>> -> memref<1x256xf32, #tpu.memory_space<any>>
    %26 = tpu.memref_slice %arg8[%c2_i32] : memref<3x!tpu.dma_semaphore, #tpu.memory_space<semaphore_mem>> -> memref<1x!tpu.dma_semaphore, #tpu.memory_space<semaphore_mem>>
    %27 = tpu.memref_squeeze %26 : memref<1x!tpu.dma_semaphore, #tpu.memory_space<semaphore_mem>> -> memref<!tpu.dma_semaphore, #tpu.memory_space<semaphore_mem>>
    tpu.enqueue_dma source(%24 : memref<1x256xf32, #tpu.memory_space<vmem>>) target(%25 : memref<1x256xf32, #tpu.memory_space<any>>) target_semaphore(%27 : memref<!tpu.dma_semaphore, #tpu.memory_space<semaphore_mem>>)
    %c0_i32_14 = arith.constant 0 : i32
    %c0_i32_15 = arith.constant 0 : i32
    %c0_i32_16 = arith.constant 0 : i32
    %28 = tpu.memref_slice %arg7[%c0_i32_15, %c0_i32_16] : memref<3x256xf32, #tpu.memory_space<vmem>> -> memref<1x256xf32, #tpu.memory_space<vmem>>
    %29 = tpu.memref_slice %arg6[%13, %0] : memref<8x256xf32, #tpu.memory_space<any>> -> memref<1x256xf32, #tpu.memory_space<any>>
    %30 = tpu.memref_slice %arg8[%c0_i32_14] : memref<3x!tpu.dma_semaphore, #tpu.memory_space<semaphore_mem>> -> memref<1x!tpu.dma_semaphore, #tpu.memory_space<semaphore_mem>>
    %31 = tpu.memref_squeeze %30 : memref<1x!tpu.dma_semaphore, #tpu.memory_space<semaphore_mem>> -> memref<!tpu.dma_semaphore, #tpu.memory_space<semaphore_mem>>
    tpu.wait_dma2 semaphore(%31 : memref<!tpu.dma_semaphore, #tpu.memory_space<semaphore_mem>>) src(%28 : memref<1x256xf32, #tpu.memory_space<vmem>>) dst(%29 : memref<1x256xf32, #tpu.memory_space<any>>)
    %c1_i32_17 = arith.constant 1 : i32
    %c1_i32_18 = arith.constant 1 : i32
    %c0_i32_19 = arith.constant 0 : i32
    %32 = tpu.memref_slice %arg7[%c1_i32_18, %c0_i32_19] : memref<3x256xf32, #tpu.memory_space<vmem>> -> memref<1x256xf32, #tpu.memory_space<vmem>>
    %33 = tpu.memref_slice %arg6[%14, %0] : memref<8x256xf32, #tpu.memory_space<any>> -> memref<1x256xf32, #tpu.memory_space<any>>
    %34 = tpu.memref_slice %arg8[%c1_i32_17] : memref<3x!tpu.dma_semaphore, #tpu.memory_space<semaphore_mem>> -> memref<1x!tpu.dma_semaphore, #tpu.memory_space<semaphore_mem>>
    %35 = tpu.memref_squeeze %34 : memref<1x!tpu.dma_semaphore, #tpu.memory_space<semaphore_mem>> -> memref<!tpu.dma_semaphore, #tpu.memory_space<semaphore_mem>>
    tpu.wait_dma2 semaphore(%35 : memref<!tpu.dma_semaphore, #tpu.memory_space<semaphore_mem>>) src(%32 : memref<1x256xf32, #tpu.memory_space<vmem>>) dst(%33 : memref<1x256xf32, #tpu.memory_space<any>>)
    %c2_i32_20 = arith.constant 2 : i32
    %c2_i32_21 = arith.constant 2 : i32
    %c0_i32_22 = arith.constant 0 : i32
    %36 = tpu.memref_slice %arg7[%c2_i32_21, %c0_i32_22] : memref<3x256xf32, #tpu.memory_space<vmem>> -> memref<1x256xf32, #tpu.memory_space<vmem>>
    %37 = tpu.memref_slice %arg6[%15, %0] : memref<8x256xf32, #tpu.memory_space<any>> -> memref<1x256xf32, #tpu.memory_space<any>>
    %38 = tpu.memref_slice %arg8[%c2_i32_20] : memref<3x!tpu.dma_semaphore, #tpu.memory_space<semaphore_mem>> -> memref<1x!tpu.dma_semaphore, #tpu.memory_space<semaphore_mem>>
    %39 = tpu.memref_squeeze %38 : memref<1x!tpu.dma_semaphore, #tpu.memory_space<semaphore_mem>> -> memref<!tpu.dma_semaphore, #tpu.memory_space<semaphore_mem>>
    tpu.wait_dma2 semaphore(%39 : memref<!tpu.dma_semaphore, #tpu.memory_space<semaphore_mem>>) src(%36 : memref<1x256xf32, #tpu.memory_space<vmem>>) dst(%37 : memref<1x256xf32, #tpu.memory_space<any>>)
    return
  }
  func.func @transform_1(%arg0: i32, %arg1: memref<3xi32, #tpu.memory_space<smem>>) -> (i32, i32) {
    %c0_i32 = arith.constant 0 : i32
    %c0_i32_0 = arith.constant 0 : i32
    return %c0_i32, %arg0 : i32, i32
  }
  func.func @transform_2(%arg0: i32, %arg1: memref<3xi32, #tpu.memory_space<smem>>) -> (i32, i32) {
    %c0_i32 = arith.constant 0 : i32
    %c0_i32_0 = arith.constant 0 : i32
    return %c0_i32, %arg0 : i32, i32
  }
  func.func @transform_3(%arg0: i32, %arg1: memref<3xi32, #tpu.memory_space<smem>>) -> (i32, i32) {
    %c0_i32 = arith.constant 0 : i32
    %c0_i32_0 = arith.constant 0 : i32
    return %c0_i32, %arg0 : i32, i32
  }
}

</mosaic_0001>

<llo_original>
// kernel: _run_masked.1
$region0: #{_run_masked.1}
  #allocation0 [shape = 'u32[]', space=smem, size = 0x4, offset = 0x4, fixed_abs, tag = 'smem constant byte address 0x4 - core index']
  #allocation1 [shape = 'u32[144,128]{1,0:T(1,128)}', space=vmem, size = 0x12000, scoped, tag = 'internal scratch']
  #allocation2 [shape = 'f32[3,256]{1,0:T(4,128)}', space=vmem, size = 0x1000, scoped, tag = 'scratch operand']
  #allocation3 [shape = 's32[3]{0}', space=sflag, size = 0xc, scoped, tag = 'scratch operand']
  #allocation4 [shape = 's32[1]{0}', space=sflag, size = 0x4, scoped, tag = 'scoped memory for _run_masked.1']
  #allocation5 [shape = 'u8[512]{0}', space=smem, size = 0x200, scoped, tag = 'prefetched SMEM operand 0']
  #allocation6 [shape = 's32[]', space=sflag, size = 0x4, offset = 0, fixed_abs, tag = 'sflag constant byte address 0x0 - dummy sync flag']
  #allocation7 [shape = 's32[]', space=sflag, size = 0x4, offset = 0, fixed_abs, tag = 'sflag constant byte address 0x0 - dummy sync flag']
  #allocation8 [shape = 's32[]', space=sflag, size = 0x4, offset = 0, fixed_abs, tag = 'sflag constant byte address 0x0 - dummy sync flag']
  %s0 = inlined_call_operand.vmem [shape: s32[3], index: 0, kind: input, shape index: {}]
  %s1 = inlined_call_operand.vmem [shape: f32[8,256], index: 1, kind: input, shape index: {}, may-alias: {1,5}]
  %s2 = inlined_call_operand.vmem [shape: f32[3,256], index: 2, kind: input, shape index: {}]
  %s3 = inlined_call_operand.vmem [shape: f32[3,256], index: 3, kind: input, shape index: {}]
  %s4 = inlined_call_operand.vmem [shape: f32[3,256], index: 4, kind: input, shape index: {}]
  %s5 = inlined_call_operand.vmem [shape: f32[8,256], index: 5, kind: output, shape index: {}, may-alias: {1,5}]
  %s6 = sld [smem:[#allocation0]]
  $region104: #{_run_masked.1} parent=0
    _
  %s8 = ssub.s32 1, %s6
  %s9 = scalar_select 0, %s8, %s6
  %s10 = sshll.u32 %s0, 4
  %s11 = int_to_ptr.vmem [resolvable:$true] %s10
  %13 = dma.vmem_to_smem %s11, 16, [#allocation5], [#allocation4]
  %14 = dma.done [#allocation4], 16
  %15 = sfence
  // Predicated region
  $region2: #{_run_masked.1} parent=0 // pred_check
    _
  $region3: #{_run_masked.1} parent=0 // pred_check_branch
    %17 = sbr.rel (0) target = $region5
  $region4: #{_run_masked.1} parent=0 // pred_region
    _
  $region5: #{_run_masked.1} parent=0 // pred_fallthru
    _
  // Predicated region
  $region6: #{_run_masked.1} parent=0 // pred_check
    _
  $region7: #{_run_masked.1} parent=0 // pred_check_branch
    %19 = sbr.rel (0) target = $region9
  $region8: #{_run_masked.1} parent=0 // pred_region
    _
  $region9: #{_run_masked.1} parent=0 // pred_fallthru
    _
  // Predicated region
  $region10: #{_run_masked.1} parent=0 // pred_check
    _
  $region11: #{_run_masked.1} parent=0 // pred_check_branch
    %21 = sbr.rel (0) target = $region13
  $region12: #{_run_masked.1} parent=0 // pred_region
    _
  $region13: #{_run_masked.1} parent=0 // pred_fallthru
    _
  %s22 = smul.u32 0, 256
  %v23 = vld [vmem:[%s2] sm:$0x77]
  %v24 = vxor.u32 %v23, 2147483648
  %v25 = vmul.f32 %v24, 1.442695
  %v26 = vpow.pop %v25
  %v27 = vadd.f32 %v26, 1.0
  %v28 = vrcp.pop %v27
  %v29 = vmul.f32 1.0, %v28
  %v30 = vld [vmem:[%s3] sm:$0x77]
  %v31 = vld [vmem:[%s4] sm:$0x77]
  %v32 = vsub.f32 %v29, %v30
  %v33 = vmul.f32 %v31, %v32
  %v34 = vadd.f32 %v30, %v33
  %35 = vst [vmem:[#allocation2] sm:$0x77] %v34
  %s36 = sld [smem:[#allocation5]]
  %s37 = sld [smem:[#allocation5 + $0x1]]
  %s38 = sld [smem:[#allocation5 + $0x2]]
  %s39 = sshrl.u32 %s36, 3
  %s40 = sand.u32 %s36, 7
  %s41 = smul.u32 %s39, 16
  %s42 = sadd.s32 %s40, %s41
  %s43 = sshra.s32 %s22, 7
  %s44 = sand.u32 %s22, 127
  %s45 = smul.u32 %s43, 8
  %s46 = sadd.s32 %s45, %s42
  %s47 = scalar_lea.vmem %s5, %s46
  %p49 = scmp.lt.u32.totalorder 1, 8
  %p50 = pneg %p49
  // Predicated region
  $region14: #{_run_masked.1} parent=0 // pred_check
    _
  $region15: #{_run_masked.1} parent=0 // pred_check_branch
    %52 = sbr.rel (%p49) target = $region17
  $region16: #{_run_masked.1} parent=0 // pred_region
    %s69 = sand.u32 1, 7
    %p70 = scmp.eq.s32.totalorder %s69, 0
    %p71 = pneg %p70
    // Predicated region
    $region29: #{_run_masked.1} parent=16 // pred_check
      _
    $region30: #{_run_masked.1} parent=16 // pred_check_branch
      %73 = sbr.rel (%p70) target = $region32
    $region31: #{_run_masked.1} parent=16 // pred_region
      %s74 = sand.u32 1, 7
      %s75 = ssub.s32 1, %s74
      %s76 = scalar_lea.vmem [#allocation2], %s75
      %s77 = ssub.s32 1, %s74
      %s78 = scalar_lea.vmem %s47, %s77
      %s79 = sshllo.u32 0, %s74
      loop: start=0, step=1, limit=1
      $region33: #{_run_masked.1} parent=31 // loop_pre_header
        _
      $region34: #{_run_masked.1} parent=31 // loop_header
        %s81 = sphi 0, %s85
        %p82 = scmp.ge.s32.totalorder %s81, 1
        %s86 = sphi %s76, %s76
        %s87 = sphi %s78, %s78
      $region35: #{_run_masked.1} parent=31 // loop_header_branch
        %84 = sbr.rel (%p82) target = $region39
      $region36: #{_run_masked.1} parent=31 // loop_body
        %v88 = vld [vmem:[%s86] sm:%s79]
        %89 = vst [vmem:[%s87] sm:%s79] %v88
        %v90 = vld [vmem:[%s86 + $0x4] sm:%s79]
        %91 = vst [vmem:[%s87 + $0x8] sm:%s79] %v90
      $region37: #{_run_masked.1} parent=31 // loop_footer
        %s85 = sadd.s32 1, %s81
      $region38: #{_run_masked.1} parent=31 // loop_footer_branch
        %80 = sbr.rel target = $region34
      $region39: #{_run_masked.1} parent=31 // loop_exit
        _
    $region32: #{_run_masked.1} parent=16 // pred_fallthru
      _
  $region17: #{_run_masked.1} parent=0 // pred_fallthru
    _
  // Predicated region
  $region18: #{_run_masked.1} parent=0 // pred_check
    %p53 = pneg %p49
  $region19: #{_run_masked.1} parent=0 // pred_check_branch
    %55 = sbr.rel (%p53) target = $region21
  $region20: #{_run_masked.1} parent=0 // pred_region
    %s56 = sshllo.u32 0, 1
    loop: start=0, step=1, limit=1
    $region22: #{_run_masked.1} parent=20 // loop_pre_header
      _
    $region23: #{_run_masked.1} parent=20 // loop_header
      %s58 = sphi 0, %s62
      %p59 = scmp.ge.s32.totalorder %s58, 1
      %s63 = sphi [#allocation2], [#allocation2]
      %s64 = sphi %s47, %s47
    $region24: #{_run_masked.1} parent=20 // loop_header_branch
      %61 = sbr.rel (%p59) target = $region28
    $region25: #{_run_masked.1} parent=20 // loop_body
      %v65 = vld [vmem:[%s63] sm:%s56]
      %66 = vst [vmem:[%s64] sm:%s56] %v65
      %v67 = vld [vmem:[%s63 + $0x4] sm:%s56]
      %68 = vst [vmem:[%s64 + $0x8] sm:%s56] %v67
    $region26: #{_run_masked.1} parent=20 // loop_footer
      %s62 = sadd.s32 1, %s58
    $region27: #{_run_masked.1} parent=20 // loop_footer_branch
      %57 = sbr.rel target = $region23
    $region28: #{_run_masked.1} parent=20 // loop_exit
      _
  $region21: #{_run_masked.1} parent=0 // pred_fallthru
    _
  // Predicated region
  $region40: #{_run_masked.1} parent=0 // pred_check
    _
  $region41: #{_run_masked.1} parent=0 // pred_check_branch
    %94 = sbr.rel (0) target = $region43
  $region42: #{_run_masked.1} parent=0 // pred_region
    %95 = vsyncadd [#allocation3], 32
  $region43: #{_run_masked.1} parent=0 // pred_fallthru
    _
  %s96 = scalar_lea.vmem [#allocation2], 1
  %s97 = sshrl.u32 %s37, 3
  %s98 = sand.u32 %s37, 7
  %s99 = smul.u32 %s97, 16
  %s100 = sadd.s32 %s98, %s99
  %s101 = sadd.s32 %s45, %s100
  %s102 = scalar_lea.vmem %s5, %s101
  %s103 = scalar_lea.sflag [#allocation3], 1
  %p105 = scmp.lt.u32.totalorder 1, 8
  %p106 = pneg %p105
  // Predicated region
  $region44: #{_run_masked.1} parent=0 // pred_check
    _
  $region45: #{_run_masked.1} parent=0 // pred_check_branch
    %108 = sbr.rel (%p105) target = $region47
  $region46: #{_run_masked.1} parent=0 // pred_region
    %s125 = sand.u32 1, 7
    %p126 = scmp.eq.s32.totalorder %s125, 0
    %p127 = pneg %p126
    // Predicated region
    $region59: #{_run_masked.1} parent=46 // pred_check
      _
    $region60: #{_run_masked.1} parent=46 // pred_check_branch
      %129 = sbr.rel (%p126) target = $region62
    $region61: #{_run_masked.1} parent=46 // pred_region
      %s130 = sand.u32 1, 7
      %s131 = ssub.s32 1, %s130
      %s132 = scalar_lea.vmem %s96, %s131 [#allocation2]
      %s133 = ssub.s32 1, %s130
      %s134 = scalar_lea.vmem %s102, %s133
      %s135 = sshllo.u32 0, %s130
      loop: start=0, step=1, limit=1
      $region63: #{_run_masked.1} parent=61 // loop_pre_header
        _
      $region64: #{_run_masked.1} parent=61 // loop_header
        %s137 = sphi 0, %s141
        %p138 = scmp.ge.s32.totalorder %s137, 1
        %s142 = sphi %s132, %s132
        %s143 = sphi %s134, %s134
      $region65: #{_run_masked.1} parent=61 // loop_header_branch
        %140 = sbr.rel (%p138) target = $region69
      $region66: #{_run_masked.1} parent=61 // loop_body
        %v144 = vld [vmem:[%s142] sm:%s135]
        %145 = vst [vmem:[%s143] sm:%s135] %v144
        %v146 = vld [vmem:[%s142 + $0x4] sm:%s135]
        %147 = vst [vmem:[%s143 + $0x8] sm:%s135] %v146
      $region67: #{_run_masked.1} parent=61 // loop_footer
        %s141 = sadd.s32 1, %s137
      $region68: #{_run_masked.1} parent=61 // loop_footer_branch
        %136 = sbr.rel target = $region64
      $region69: #{_run_masked.1} parent=61 // loop_exit
        _
    $region62: #{_run_masked.1} parent=46 // pred_fallthru
      _
  $region47: #{_run_masked.1} parent=0 // pred_fallthru
    _
  // Predicated region
  $region48: #{_run_masked.1} parent=0 // pred_check
    %p109 = pneg %p105
  $region49: #{_run_masked.1} parent=0 // pred_check_branch
    %111 = sbr.rel (%p109) target = $region51
  $region50: #{_run_masked.1} parent=0 // pred_region
    %s112 = sshllo.u32 0, 1
    loop: start=0, step=1, limit=1
    $region52: #{_run_masked.1} parent=50 // loop_pre_header
      _
    $region53: #{_run_masked.1} parent=50 // loop_header
      %s114 = sphi 0, %s118
      %p115 = scmp.ge.s32.totalorder %s114, 1
      %s119 = sphi %s96, %s96
      %s120 = sphi %s102, %s102
    $region54: #{_run_masked.1} parent=50 // loop_header_branch
      %117 = sbr.rel (%p115) target = $region58
    $region55: #{_run_masked.1} parent=50 // loop_body
      %v121 = vld [vmem:[%s119] sm:%s112]
      %122 = vst [vmem:[%s120] sm:%s112] %v121
      %v123 = vld [vmem:[%s119 + $0x4] sm:%s112]
      %124 = vst [vmem:[%s120 + $0x8] sm:%s112] %v123
    $region56: #{_run_masked.1} parent=50 // loop_footer
      %s118 = sadd.s32 1, %s114
    $region57: #{_run_masked.1} parent=50 // loop_footer_branch
      %113 = sbr.rel target = $region53
    $region58: #{_run_masked.1} parent=50 // loop_exit
      _
  $region51: #{_run_masked.1} parent=0 // pred_fallthru
    _
  // Predicated region
  $region70: #{_run_masked.1} parent=0 // pred_check
    _
  $region71: #{_run_masked.1} parent=0 // pred_check_branch
    %150 = sbr.rel (0) target = $region73
  $region72: #{_run_masked.1} parent=0 // pred_region
    %151 = vsyncadd %s103, 32
  $region73: #{_run_masked.1} parent=0 // pred_fallthru
    _
  %s152 = scalar_lea.vmem [#allocation2], 2
  %s153 = sshrl.u32 %s38, 3
  %s154 = sand.u32 %s38, 7
  %s155 = smul.u32 %s153, 16
  %s156 = sadd.s32 %s154, %s155
  %s157 = sadd.s32 %s45, %s156
  %s158 = scalar_lea.vmem %s5, %s157
  %s159 = scalar_lea.sflag [#allocation3], 2
  %p161 = scmp.lt.u32.totalorder 1, 8
  %p162 = pneg %p161
  // Predicated region
  $region74: #{_run_masked.1} parent=0 // pred_check
    _
  $region75: #{_run_masked.1} parent=0 // pred_check_branch
    %164 = sbr.rel (%p161) target = $region77
  $region76: #{_run_masked.1} parent=0 // pred_region
    %s181 = sand.u32 1, 7
    %p182 = scmp.eq.s32.totalorder %s181, 0
    %p183 = pneg %p182
    // Predicated region
    $region89: #{_run_masked.1} parent=76 // pred_check
      _
    $region90: #{_run_masked.1} parent=76 // pred_check_branch
      %185 = sbr.rel (%p182) target = $region92
    $region91: #{_run_masked.1} parent=76 // pred_region
      %s186 = sand.u32 1, 7
      %s187 = ssub.s32 1, %s186
      %s188 = scalar_lea.vmem %s152, %s187 [#allocation2]
      %s189 = ssub.s32 1, %s186
      %s190 = scalar_lea.vmem %s158, %s189
      %s191 = sshllo.u32 0, %s186
      loop: start=0, step=1, limit=1
      $region93: #{_run_masked.1} parent=91 // loop_pre_header
        _
      $region94: #{_run_masked.1} parent=91 // loop_header
        %s193 = sphi 0, %s197
        %p194 = scmp.ge.s32.totalorder %s193, 1
        %s198 = sphi %s188, %s188
        %s199 = sphi %s190, %s190
      $region95: #{_run_masked.1} parent=91 // loop_header_branch
        %196 = sbr.rel (%p194) target = $region99
      $region96: #{_run_masked.1} parent=91 // loop_body
        %v200 = vld [vmem:[%s198] sm:%s191]
        %201 = vst [vmem:[%s199] sm:%s191] %v200
        %v202 = vld [vmem:[%s198 + $0x4] sm:%s191]
        %203 = vst [vmem:[%s199 + $0x8] sm:%s191] %v202
      $region97: #{_run_masked.1} parent=91 // loop_footer
        %s197 = sadd.s32 1, %s193
      $region98: #{_run_masked.1} parent=91 // loop_footer_branch
        %192 = sbr.rel target = $region94
      $region99: #{_run_masked.1} parent=91 // loop_exit
        _
    $region92: #{_run_masked.1} parent=76 // pred_fallthru
      _
  $region77: #{_run_masked.1} parent=0 // pred_fallthru
    _
  // Predicated region
  $region78: #{_run_masked.1} parent=0 // pred_check
    %p165 = pneg %p161
  $region79: #{_run_masked.1} parent=0 // pred_check_branch
    %167 = sbr.rel (%p165) target = $region81
  $region80: #{_run_masked.1} parent=0 // pred_region
    %s168 = sshllo.u32 0, 1
    loop: start=0, step=1, limit=1
    $region82: #{_run_masked.1} parent=80 // loop_pre_header
      _
    $region83: #{_run_masked.1} parent=80 // loop_header
      %s170 = sphi 0, %s174
      %p171 = scmp.ge.s32.totalorder %s170, 1
      %s175 = sphi %s152, %s152
      %s176 = sphi %s158, %s158
    $region84: #{_run_masked.1} parent=80 // loop_header_branch
      %173 = sbr.rel (%p171) target = $region88
    $region85: #{_run_masked.1} parent=80 // loop_body
      %v177 = vld [vmem:[%s175] sm:%s168]
      %178 = vst [vmem:[%s176] sm:%s168] %v177
      %v179 = vld [vmem:[%s175 + $0x4] sm:%s168]
      %180 = vst [vmem:[%s176 + $0x8] sm:%s168] %v179
    $region86: #{_run_masked.1} parent=80 // loop_footer
      %s174 = sadd.s32 1, %s170
    $region87: #{_run_masked.1} parent=80 // loop_footer_branch
      %169 = sbr.rel target = $region83
    $region88: #{_run_masked.1} parent=80 // loop_exit
      _
  $region81: #{_run_masked.1} parent=0 // pred_fallthru
    _
  // Predicated region
  $region100: #{_run_masked.1} parent=0 // pred_check
    _
  $region101: #{_run_masked.1} parent=0 // pred_check_branch
    %206 = sbr.rel (0) target = $region103
  $region102: #{_run_masked.1} parent=0 // pred_region
    %207 = vsyncadd %s159, 32
  $region103: #{_run_masked.1} parent=0 // pred_fallthru
    _
  %s208 = smul.u32 1, 2
  %s209 = sshll.u32 %s208, 4
  %210 = dma.done [#allocation3], %s209
  %s211 = sshll.u32 %s208, 4
  %212 = dma.done %s103, %s211
  %s213 = sshll.u32 %s208, 4
  %214 = dma.done %s159, %s213
  %215 = vsyncmov [#allocation3]
  %s216 = vpop.sfrf %215
  %p217 = scmp.eq.s32.totalorder %s216, 0
  %p218 = pneg %p217
  %220 = shalt.err (%p218)
  %s221 = scalar_lea.sflag [#allocation3], 1
  %222 = vsyncmov %s221
  %s223 = vpop.sfrf %222
  %p224 = scmp.eq.s32.totalorder %s223, 0
  %p225 = pneg %p224
  %227 = shalt.err (%p225)
  %s228 = scalar_lea.sflag [#allocation3], 2
  %229 = vsyncmov %s228
  %s230 = vpop.sfrf %229
  %p231 = scmp.eq.s32.totalorder %s230, 0
  %p232 = pneg %p231
  %234 = shalt.err (%p232)

</llo_original>
